<compile_context>
chip_gen: v7x
topology: tpu7x:2x2x1
jax: 0.10.0
libtpu: 0.0.40
codegen_flags: <defaults>
</compile_context>

<pallas_src>
import functools

import jax
import jax.numpy as jnp
from jax import lax
from jax.experimental import pallas as pl
from jax.experimental.pallas import tpu as pltpu


def _cosine_loss_kernel(p_ref, t_ref, o_ref, pt_acc, pp_acc, tt_acc,
                        *, D, tile_d, ragged):
    k = pl.program_id(1)

    @pl.when(k == 0)
    def _init():
        pt_acc[...] = jnp.zeros_like(pt_acc)
        pp_acc[...] = jnp.zeros_like(pp_acc)
        tt_acc[...] = jnp.zeros_like(tt_acc)

    p = p_ref[...].astype(jnp.float32)
    t = t_ref[...].astype(jnp.float32)

    if ragged:
        # Only emitted when D % tile_d != 0: mask columns past D (OOB region of
        # the last block holds unspecified data, so use where, not multiply).
        col = k * tile_d + lax.broadcasted_iota(jnp.int32, p.shape, 1)
        mask = col < D
        p = jnp.where(mask, p, 0.0)
        t = jnp.where(mask, t, 0.0)

    # Hot loop: pure VPU, lane-dense accumulators (no per-step XLU reduce).
    pt_acc[...] += p * t
    pp_acc[...] += p * p
    tt_acc[...] += t * t

    @pl.when(k == pl.num_programs(1) - 1)
    def _finalize():
        eps2 = jnp.float32(1e-24)  # (F.normalize eps = 1e-12) ** 2
        dot = jnp.sum(pt_acc[...], axis=-1, keepdims=True)
        pp = jnp.sum(pp_acc[...], axis=-1, keepdims=True)
        tt = jnp.sum(tt_acc[...], axis=-1, keepdims=True)
        # max(sqrt(x), eps) == sqrt(max(x, eps^2)); rsqrt routes to the EUP.
        inv = lax.rsqrt(jnp.maximum(pp, eps2)) * lax.rsqrt(jnp.maximum(tt, eps2))
        o_ref[...] = 1.0 - dot * inv


def _select_tiles(B, D, itemsize, max_batch_tile, max_tile_d):
    """Static (trace-time) tile selection under a ~24 MiB VMEM working-set budget."""
    # Batch tile: largest multiple-of-8 divisor of B up to the cap, else full B.
    if B % 8 == 0:
        tb = 8
        cand = 16
        while cand <= min(B, max(8, max_batch_tile)):
            if B % cand == 0:
                tb = cand
            cand += 8
    else:
        tb = B  # block equals the full batch dim -> always legal

    # Feature tile: multiple of 128, sized so
    #   2 inputs * 2 buffers * tb * tile_d * itemsize + 3 * tb * tile_d * 4  <= budget
    vmem_budget = 24 * 1024 * 1024
    per_col = tb * (2 * 2 * itemsize + 3 * 4)
    cap = max(128, (vmem_budget // per_col) // 128 * 128)
    cap = min(cap, 8192)
    if max_tile_d is not None:
        cap = min(cap, max(128, (max_tile_d // 128) * 128))

    if D <= cap:
        return tb, D, 1, False        # single full-width tile, no masking
    tile_d = cap
    n_k = -(-D // tile_d)
    ragged = (D % tile_d) != 0
    return tb, tile_d, n_k, ragged


@functools.partial(jax.jit, static_argnames=("max_tile_d", "max_batch_tile"))
def cosine_loss(predictions, targets, *, max_tile_d=None, max_batch_tile=256):
    B = predictions.shape[0]
    p = predictions.reshape(B, -1)
    t = targets.reshape(B, -1)
    D = p.shape[1]

    tb, tile_d, n_k, ragged = _select_tiles(
        B, D, jnp.dtype(p.dtype).itemsize, max_batch_tile, max_tile_d)

    kernel = functools.partial(
        _cosine_loss_kernel, D=D, tile_d=tile_d, ragged=ragged)

    grid_spec = pltpu.PrefetchScalarGridSpec(
        num_scalar_prefetch=0,
        grid=(B // tb, n_k),
        in_specs=[
            pl.BlockSpec((tb, tile_d), lambda i, k: (i, k)),
            pl.BlockSpec((tb, tile_d), lambda i, k: (i, k)),
        ],
        out_specs=pl.BlockSpec((tb, 1), lambda i, k: (i, 0)),
        scratch_shapes=[
            pltpu.VMEM((tb, tile_d), jnp.float32),  # sum(p*t) accumulator
            pltpu.VMEM((tb, tile_d), jnp.float32),  # sum(p*p) accumulator
            pltpu.VMEM((tb, tile_d), jnp.float32),  # sum(t*t) accumulator
        ],
    )

    per_row = pl.pallas_call(
        kernel,
        out_shape=jax.ShapeDtypeStruct((B, 1), jnp.float32),
        grid_spec=grid_spec,
        compiler_params=pltpu.CompilerParams(
            dimension_semantics=("parallel", "arbitrary"),
            vmem_limit_bytes=48 * 1024 * 1024,
        ),
    )(p, t)

    # Tiny batch-mean done in XLA so the batch grid axis stays fully parallel.
    return jnp.mean(per_row)


def cosine_loss_ref(predictions, targets):
    """Pure-JAX reference mirroring the PyTorch CosineLoss."""
    B = predictions.shape[0]
    p = predictions.reshape(B, -1).astype(jnp.float32)
    t = targets.reshape(B, -1).astype(jnp.float32)
    eps = 1e-12
    p = p / jnp.maximum(jnp.linalg.norm(p, axis=-1, keepdims=True), eps)
    t = t / jnp.maximum(jnp.linalg.norm(t, axis=-1, keepdims=True), eps)
    cos = jnp.sum(p * t, axis=-1)
    return jnp.mean(1.0 - cos)


if __name__ == "__main__":
    key = jax.random.PRNGKey(0)
    k1, k2, k3, k4 = jax.random.split(key, 4)

    # Case 1: small (B, C, H, W) feature maps, f32, single feature tile.
    B, C, H, W = 2, 4, 16, 16
    pred = jax.random.normal(k1, (B, C, H, W), dtype=jnp.float32)
    targ = jax.random.normal(k2, (B, C, H, W), dtype=jnp.float32)
    loss = cosine_loss(pred, targ)
    jax.block_until_ready(loss)
    ref = cosine_loss_ref(pred, targ)
    assert jnp.allclose(loss, ref, atol=1e-5, rtol=1e-5), (loss, ref)

    # Case 2: same inputs, force multiple feature tiles with a ragged tail
    # (D=1024 = 2*384 + 256) to exercise the in-kernel mask path (no jnp.pad).
    loss2 = cosine_loss(pred, targ, max_tile_d=384)
    jax.block_until_ready(loss2)
    assert jnp.allclose(loss2, ref, atol=1e-5, rtol=1e-5), (loss2, ref)

    # Case 3: bf16 inputs, multiple batch tiles (parallel axis + per-tile
    # accumulator re-init).
    B2, C2, H2, W2 = 16, 4, 8, 8
    pred3 = jax.random.normal(k3, (B2, C2, H2, W2), dtype=jnp.bfloat16)
    targ3 = jax.random.normal(k4, (B2, C2, H2, W2), dtype=jnp.bfloat16)
    loss3 = cosine_loss(pred3, targ3, max_batch_tile=8)
    jax.block_until_ready(loss3)
    ref3 = cosine_loss_ref(pred3, targ3)
    assert jnp.allclose(loss3, ref3, atol=1e-4, rtol=1e-4), (loss3, ref3)

    print("KERNEL_OK")
</pallas_src>

<mosaic_0001>
module attributes {stable_mosaic.version = 11 : i64} {
  func.func @_cosine_loss_kernel(%arg0: i32, %arg1: i32, %arg2: memref<2x1024xf32, #tpu.memory_space<vmem>>, %arg3: memref<2x1024xf32, #tpu.memory_space<vmem>>, %arg4: memref<2x1xf32, #tpu.memory_space<vmem>>, %arg5: memref<2x1024xf32, #tpu.memory_space<vmem>>, %arg6: memref<2x1024xf32, #tpu.memory_space<vmem>>, %arg7: memref<2x1024xf32, #tpu.memory_space<vmem>>) attributes {dimension_semantics = [#tpu.dimension_semantics<parallel>, #tpu.dimension_semantics<arbitrary>], iteration_bounds = array<i64: 1, 1>, scalar_prefetch = 0 : i64, scratch_operands = 3 : i64, tpu.core_type = #tpu.core_type<tc>, window_params = [{transform_indices = @transform_0, window_bounds = array<i64: 2, 1024>}, {transform_indices = @transform_1, window_bounds = array<i64: 2, 1024>}, {transform_indices = @transform_2, window_bounds = array<i64: 2, 1>}]} {
    %c0_i32 = arith.constant 0 : i32
    %0 = arith.cmpi eq, %arg1, %c0_i32 : i32
    %1 = arith.extui %0 : i1 to i32
    %c0_i32_0 = arith.constant 0 : i32
    %2 = arith.cmpi ne, %1, %c0_i32_0 : i32
    scf.if %2 {
      %cst = arith.constant 0.000000e+00 : f32
      %20 = vector.broadcast %cst : f32 to vector<2x1024xf32>
      %c0_18 = arith.constant 0 : index
      %c0_19 = arith.constant 0 : index
      %21 = vector.load %arg5[%c0_18, %c0_19] : memref<2x1024xf32, #tpu.memory_space<vmem>>, vector<2x1024xf32>
      tpu.vector_store %arg5[%c0_18, %c0_19], %20 {strides = array<i32>} : memref<2x1024xf32, #tpu.memory_space<vmem>>, vector<2x1024xf32>,
      %cst_20 = arith.constant 0.000000e+00 : f32
      %22 = vector.broadcast %cst_20 : f32 to vector<2x1024xf32>
      %c0_21 = arith.constant 0 : index
      %c0_22 = arith.constant 0 : index
      %23 = vector.load %arg6[%c0_21, %c0_22] : memref<2x1024xf32, #tpu.memory_space<vmem>>, vector<2x1024xf32>
      tpu.vector_store %arg6[%c0_21, %c0_22], %22 {strides = array<i32>} : memref<2x1024xf32, #tpu.memory_space<vmem>>, vector<2x1024xf32>,
      %cst_23 = arith.constant 0.000000e+00 : f32
      %24 = vector.broadcast %cst_23 : f32 to vector<2x1024xf32>
      %c0_24 = arith.constant 0 : index
      %c0_25 = arith.constant 0 : index
      %25 = vector.load %arg7[%c0_24, %c0_25] : memref<2x1024xf32, #tpu.memory_space<vmem>>, vector<2x1024xf32>
      tpu.vector_store %arg7[%c0_24, %c0_25], %24 {strides = array<i32>} : memref<2x1024xf32, #tpu.memory_space<vmem>>, vector<2x1024xf32>,
    } else {
    }
    %c0 = arith.constant 0 : index
    %c0_1 = arith.constant 0 : index
    %3 = vector.load %arg2[%c0, %c0_1] : memref<2x1024xf32, #tpu.memory_space<vmem>>, vector<2x1024xf32>
    %c0_2 = arith.constant 0 : index
    %c0_3 = arith.constant 0 : index
    %4 = vector.load %arg3[%c0_2, %c0_3] : memref<2x1024xf32, #tpu.memory_space<vmem>>, vector<2x1024xf32>
    %c0_4 = arith.constant 0 : index
    %c0_5 = arith.constant 0 : index
    %5 = vector.load %arg5[%c0_4, %c0_5] : memref<2x1024xf32, #tpu.memory_space<vmem>>, vector<2x1024xf32>
    %6 = arith.mulf %3, %4 : vector<2x1024xf32>
    %7 = arith.addf %5, %6 : vector<2x1024xf32>
    %c0_6 = arith.constant 0 : index
    %c0_7 = arith.constant 0 : index
    %8 = vector.load %arg5[%c0_6, %c0_7] : memref<2x1024xf32, #tpu.memory_space<vmem>>, vector<2x1024xf32>
    tpu.vector_store %arg5[%c0_6, %c0_7], %7 {strides = array<i32>} : memref<2x1024xf32, #tpu.memory_space<vmem>>, vector<2x1024xf32>,
    %c0_8 = arith.constant 0 : index
    %c0_9 = arith.constant 0 : index
    %9 = vector.load %arg6[%c0_8, %c0_9] : memref<2x1024xf32, #tpu.memory_space<vmem>>, vector<2x1024xf32>
    %10 = arith.mulf %3, %3 : vector<2x1024xf32>
    %11 = arith.addf %9, %10 : vector<2x1024xf32>
    %c0_10 = arith.constant 0 : index
    %c0_11 = arith.constant 0 : index
    %12 = vector.load %arg6[%c0_10, %c0_11] : memref<2x1024xf32, #tpu.memory_space<vmem>>, vector<2x1024xf32>
    tpu.vector_store %arg6[%c0_10, %c0_11], %11 {strides = array<i32>} : memref<2x1024xf32, #tpu.memory_space<vmem>>, vector<2x1024xf32>,
    %c0_12 = arith.constant 0 : index
    %c0_13 = arith.constant 0 : index
    %13 = vector.load %arg7[%c0_12, %c0_13] : memref<2x1024xf32, #tpu.memory_space<vmem>>, vector<2x1024xf32>
    %14 = arith.mulf %4, %4 : vector<2x1024xf32>
    %15 = arith.addf %13, %14 : vector<2x1024xf32>
    %c0_14 = arith.constant 0 : index
    %c0_15 = arith.constant 0 : index
    %16 = vector.load %arg7[%c0_14, %c0_15] : memref<2x1024xf32, #tpu.memory_space<vmem>>, vector<2x1024xf32>
    tpu.vector_store %arg7[%c0_14, %c0_15], %15 {strides = array<i32>} : memref<2x1024xf32, #tpu.memory_space<vmem>>, vector<2x1024xf32>,
    %c0_i32_16 = arith.constant 0 : i32
    %17 = arith.cmpi eq, %arg1, %c0_i32_16 : i32
    %18 = arith.extui %17 : i1 to i32
    %c0_i32_17 = arith.constant 0 : i32
    %19 = arith.cmpi ne, %18, %c0_i32_17 : i32
    scf.if %19 {
      %c0_18 = arith.constant 0 : index
      %c0_19 = arith.constant 0 : index
      %20 = vector.load %arg5[%c0_18, %c0_19] : memref<2x1024xf32, #tpu.memory_space<vmem>>, vector<2x1024xf32>
      %cst = arith.constant dense<0.000000e+00> : vector<2xf32>
      %21 = vector.multi_reduction <add>, %20, %cst [1] : vector<2x1024xf32> to vector<2xf32>
      %22 = vector.shape_cast %21 : vector<2xf32> to vector<2x1xf32>
      %c0_20 = arith.constant 0 : index
      %c0_21 = arith.constant 0 : index
      %23 = vector.load %arg6[%c0_20, %c0_21] : memref<2x1024xf32, #tpu.memory_space<vmem>>, vector<2x1024xf32>
      %cst_22 = arith.constant dense<0.000000e+00> : vector<2xf32>
      %24 = vector.multi_reduction <add>, %23, %cst_22 [1] : vector<2x1024xf32> to vector<2xf32>
      %25 = vector.shape_cast %24 : vector<2xf32> to vector<2x1xf32>
      %c0_23 = arith.constant 0 : index
      %c0_24 = arith.constant 0 : index
      %26 = vector.load %arg7[%c0_23, %c0_24] : memref<2x1024xf32, #tpu.memory_space<vmem>>, vector<2x1024xf32>
      %cst_25 = arith.constant dense<0.000000e+00> : vector<2xf32>
      %27 = vector.multi_reduction <add>, %26, %cst_25 [1] : vector<2x1024xf32> to vector<2xf32>
      %28 = vector.shape_cast %27 : vector<2xf32> to vector<2x1xf32>
      %cst_26 = arith.constant 1.000000e-24 : f32
      %29 = vector.broadcast %cst_26 : f32 to vector<2x1xf32>
      %30 = arith.maximumf %25, %29 : vector<2x1xf32>
      %31 = math.rsqrt %30 : vector<2x1xf32>
      %cst_27 = arith.constant 1.000000e-24 : f32
      %32 = vector.broadcast %cst_27 : f32 to vector<2x1xf32>
      %33 = arith.maximumf %28, %32 : vector<2x1xf32>
      %34 = math.rsqrt %33 : vector<2x1xf32>
      %35 = arith.mulf %31, %34 : vector<2x1xf32>
      %36 = arith.mulf %22, %35 : vector<2x1xf32>
      %cst_28 = arith.constant 1.000000e+00 : f32
      %37 = vector.broadcast %cst_28 : f32 to vector<2x1xf32>
      %38 = arith.subf %37, %36 : vector<2x1xf32>
      %c0_29 = arith.constant 0 : index
      %c0_30 = arith.constant 0 : index
      %39 = vector.load %arg4[%c0_29, %c0_30] : memref<2x1xf32, #tpu.memory_space<vmem>>, vector<2x1xf32>
      tpu.vector_store %arg4[%c0_29, %c0_30], %38 {strides = array<i32>} : memref<2x1xf32, #tpu.memory_space<vmem>>, vector<2x1xf32>,
    } else {
    }
    return
  }
  func.func @transform_0(%arg0: i32, %arg1: i32) -> (i32, i32) {
    %c0_i32 = arith.constant 0 : i32
    return %arg0, %arg1 : i32, i32
  }
  func.func @transform_1(%arg0: i32, %arg1: i32) -> (i32, i32) {
    %c0_i32 = arith.constant 0 : i32
    return %arg0, %arg1 : i32, i32
  }
  func.func @transform_2(%arg0: i32, %arg1: i32) -> (i32, i32) {
    %c0_i32 = arith.constant 0 : i32
    %c0_i32_0 = arith.constant 0 : i32
    return %arg0, %c0_i32 : i32, i32
  }
}

</mosaic_0001>

<llo_original>
// kernel: cosine_loss.1
$region0: #{cosine_loss.1}
  #allocation0 [shape = 'u32[]', space=smem, size = 0x4, offset = 0x4, fixed_abs, tag = 'smem constant byte address 0x4 - core index']
  #allocation1 [shape = 'u32[144,128]{1,0:T(1,128)}', space=vmem, size = 0x12000, scoped, tag = 'internal scratch']
  #allocation2 [shape = 'f32[2,1024]{1,0:T(2,128)}', space=vmem, size = 0x2000, scoped, tag = 'scratch operand']
  #allocation3 [shape = 'f32[2,1024]{1,0:T(2,128)}', space=vmem, size = 0x2000, scoped, tag = 'scratch operand']
  #allocation4 [shape = 'f32[2,1024]{1,0:T(2,128)}', space=vmem, size = 0x2000, scoped, tag = 'scratch operand']
  %s0 = inlined_call_operand.vmem [shape: f32[2,1024], index: 0, kind: input, shape index: {}]
  %s1 = inlined_call_operand.vmem [shape: f32[2,1024], index: 1, kind: input, shape index: {}]
  %s2 = inlined_call_operand.vmem [shape: f32[2,1], index: 2, kind: output, shape index: {}]
  %s3 = sld [smem:[#allocation0]]
  $region26: #{cosine_loss.1} parent=0
    _
  %s5 = ssub.s32 1, %s3
  %s6 = scalar_select 0, %s5, %s3
  // Predicated region
  $region2: #{cosine_loss.1} parent=0 // pred_check
    _
  $region3: #{cosine_loss.1} parent=0 // pred_check_branch
    %8 = sbr.rel (0) target = $region5
  $region4: #{cosine_loss.1} parent=0 // pred_region
    _
  $region5: #{cosine_loss.1} parent=0 // pred_fallthru
    _
  // Predicated region
  $region6: #{cosine_loss.1} parent=0 // pred_check
    _
  $region7: #{cosine_loss.1} parent=0 // pred_check_branch
    %10 = sbr.rel (0) target = $region9
  $region8: #{cosine_loss.1} parent=0 // pred_region
    _
  $region9: #{cosine_loss.1} parent=0 // pred_fallthru
    _
  %p11 = scmp.eq.s32.totalorder 0, 0
  // Predicated region
  $region10: #{cosine_loss.1} parent=0 // pred_check
    %p12 = pneg %p11
  $region11: #{cosine_loss.1} parent=0 // pred_check_branch
    %14 = sbr.rel (%p12) target = $region13
  $region12: #{cosine_loss.1} parent=0 // pred_region
    %15 = vst [vmem:[#allocation2] sm:$0xff] 0.0
    %16 = vst [vmem:[#allocation2 + $0x8] sm:$0xff] 0.0
    %17 = vst [vmem:[#allocation3] sm:$0xff] 0.0
    %18 = vst [vmem:[#allocation3 + $0x8] sm:$0xff] 0.0
    %19 = vst [vmem:[#allocation4] sm:$0xff] 0.0
    %20 = vst [vmem:[#allocation4 + $0x8] sm:$0xff] 0.0
  $region13: #{cosine_loss.1} parent=0 // pred_fallthru
    _
  %v21 = vld [vmem:[%s0] sm:$0xff]
  %v22 = vld [vmem:[%s0 + $0x8] sm:$0xff]
  %v23 = vld [vmem:[%s1] sm:$0xff]
  %v24 = vld [vmem:[%s1 + $0x8] sm:$0xff]
  %v25 = vld [vmem:[#allocation2] sm:$0xff]
  %v26 = vld [vmem:[#allocation2 + $0x8] sm:$0xff]
  %v27 = vmul.f32 %v21, %v23
  %v28 = vmul.f32 %v22, %v24
  %v29 = vadd.f32 %v25, %v27
  %v30 = vadd.f32 %v26, %v28
  %31 = vst [vmem:[#allocation2] sm:$0xff] %v29
  %32 = vst [vmem:[#allocation2 + $0x8] sm:$0xff] %v30
  %v33 = vld [vmem:[#allocation3] sm:$0xff]
  %v34 = vld [vmem:[#allocation3 + $0x8] sm:$0xff]
  %v35 = vmul.f32 %v21, %v21
  %v36 = vmul.f32 %v22, %v22
  %v37 = vadd.f32 %v33, %v35
  %v38 = vadd.f32 %v34, %v36
  %39 = vst [vmem:[#allocation3] sm:$0xff] %v37
  %40 = vst [vmem:[#allocation3 + $0x8] sm:$0xff] %v38
  %v41 = vld [vmem:[#allocation4] sm:$0xff]
  %v42 = vld [vmem:[#allocation4 + $0x8] sm:$0xff]
  %v43 = vmul.f32 %v23, %v23
  %v44 = vmul.f32 %v24, %v24
  %v45 = vadd.f32 %v41, %v43
  %v46 = vadd.f32 %v42, %v44
  %47 = vst [vmem:[#allocation4] sm:$0xff] %v45
  %48 = vst [vmem:[#allocation4 + $0x8] sm:$0xff] %v46
  // Predicated region
  $region14: #{cosine_loss.1} parent=0 // pred_check
    %p49 = pneg %p11
  $region15: #{cosine_loss.1} parent=0 // pred_check_branch
    %51 = sbr.rel (%p49) target = $region17
  $region16: #{cosine_loss.1} parent=0 // pred_region
    %v52 = vld [vmem:[#allocation2] sm:$0xff]
    %v53 = vld [vmem:[#allocation2 + $0x8] sm:$0xff]
    %v56 = vcombine.high %v52, %v52
    %v58 = vunpack.c.l.s4 1983009808
    %v59 = vunpack.c.0.s8 %v58
    %v60 = vlaneseq
    %v61 = vshrl.u32 %v60, 7
    %v62 = vsub.s32 %v59, %v61
    %v63 = vrot.slane %v52, %v62
    %v65 = vunpack.c.l.s4 1983009808
    %v66 = vunpack.c.0.s8 %v65
    %v67 = vlaneseq
    %v68 = vshrl.u32 %v67, 7
    %v69 = vsub.s32 %v66, %v68
    %v70 = vrot.slane %v56, %v69
    %v71 = vcombine.high %v63, %v63
    %v72 = vcombine.high %v70, %v70
    %v73 = vcombine.high %v53, %v53
    %v75 = vunpack.c.l.s4 1983009808
    %v76 = vunpack.c.0.s8 %v75
    %v77 = vlaneseq
    %v78 = vshrl.u32 %v77, 7
    %v79 = vsub.s32 %v76, %v78
    %v80 = vrot.slane %v53, %v79
    %v82 = vunpack.c.l.s4 1983009808
    %v83 = vunpack.c.0.s8 %v82
    %v84 = vlaneseq
    %v85 = vshrl.u32 %v84, 7
    %v86 = vsub.s32 %v83, %v85
    %v87 = vrot.slane %v73, %v86
    %v88 = vcombine.high %v80, %v80
    %v89 = vcombine.high %v87, %v87
    %vm98 = vcmask 1041408
    %v99 = vsel %vm98, %v63, 0.0
    %v100 = vsel %vm98, %v71, 0.0
    %v101 = vadd.f32 %v99, %v100
    %v102 = vsel %vm98, %v70, 0.0
    %v103 = vadd.f32 %v101, %v102
    %v104 = vsel %vm98, %v72, 0.0
    %v105 = vadd.f32 %v103, %v104
    %v106 = vsel %vm98, %v80, 0.0
    %v107 = vadd.f32 %v105, %v106
    %v108 = vsel %vm98, %v88, 0.0
    %v109 = vadd.f32 %v107, %v108
    %v110 = vsel %vm98, %v87, 0.0
    %v111 = vadd.f32 %v109, %v110
    %v112 = vsel %vm98, %v89, 0.0
    %v113 = vadd.f32 %v111, %v112
    %114 = vadd.xlane.f32.xlu0 %v113
    %v115 = vpop.xlane.xlu0 %114
    %v116 = vld [vmem:[#allocation3] sm:$0xff]
    %v117 = vld [vmem:[#allocation3 + $0x8] sm:$0xff]
    %v120 = vcombine.high %v116, %v116
    %v122 = vunpack.c.l.s4 1983009808
    %v123 = vunpack.c.0.s8 %v122
    %v124 = vlaneseq
    %v125 = vshrl.u32 %v124, 7
    %v126 = vsub.s32 %v123, %v125
    %v127 = vrot.slane %v116, %v126
    %v129 = vunpack.c.l.s4 1983009808
    %v130 = vunpack.c.0.s8 %v129
    %v131 = vlaneseq
    %v132 = vshrl.u32 %v131, 7
    %v133 = vsub.s32 %v130, %v132
    %v134 = vrot.slane %v120, %v133
    %v135 = vcombine.high %v127, %v127
    %v136 = vcombine.high %v134, %v134
    %v137 = vcombine.high %v117, %v117
    %v139 = vunpack.c.l.s4 1983009808
    %v140 = vunpack.c.0.s8 %v139
    %v141 = vlaneseq
    %v142 = vshrl.u32 %v141, 7
    %v143 = vsub.s32 %v140, %v142
    %v144 = vrot.slane %v117, %v143
    %v146 = vunpack.c.l.s4 1983009808
    %v147 = vunpack.c.0.s8 %v146
    %v148 = vlaneseq
    %v149 = vshrl.u32 %v148, 7
    %v150 = vsub.s32 %v147, %v149
    %v151 = vrot.slane %v137, %v150
    %v152 = vcombine.high %v144, %v144
    %v153 = vcombine.high %v151, %v151
    %v162 = vsel %vm98, %v127, 0.0
    %v163 = vsel %vm98, %v135, 0.0
    %v164 = vadd.f32 %v162, %v163
    %v165 = vsel %vm98, %v134, 0.0
    %v166 = vadd.f32 %v164, %v165
    %v167 = vsel %vm98, %v136, 0.0
    %v168 = vadd.f32 %v166, %v167
    %v169 = vsel %vm98, %v144, 0.0
    %v170 = vadd.f32 %v168, %v169
    %v171 = vsel %vm98, %v152, 0.0
    %v172 = vadd.f32 %v170, %v171
    %v173 = vsel %vm98, %v151, 0.0
    %v174 = vadd.f32 %v172, %v173
    %v175 = vsel %vm98, %v153, 0.0
    %v176 = vadd.f32 %v174, %v175
    %177 = vadd.xlane.f32.xlu0 %v176
    %v178 = vpop.xlane.xlu0 %177
    %v179 = vld [vmem:[#allocation4] sm:$0xff]
    %v180 = vld [vmem:[#allocation4 + $0x8] sm:$0xff]
    %v183 = vcombine.high %v179, %v179
    %v185 = vunpack.c.l.s4 1983009808
    %v186 = vunpack.c.0.s8 %v185
    %v187 = vlaneseq
    %v188 = vshrl.u32 %v187, 7
    %v189 = vsub.s32 %v186, %v188
    %v190 = vrot.slane %v179, %v189
    %v192 = vunpack.c.l.s4 1983009808
    %v193 = vunpack.c.0.s8 %v192
    %v194 = vlaneseq
    %v195 = vshrl.u32 %v194, 7
    %v196 = vsub.s32 %v193, %v195
    %v197 = vrot.slane %v183, %v196
    %v198 = vcombine.high %v190, %v190
    %v199 = vcombine.high %v197, %v197
    %v200 = vcombine.high %v180, %v180
    %v202 = vunpack.c.l.s4 1983009808
    %v203 = vunpack.c.0.s8 %v202
    %v204 = vlaneseq
    %v205 = vshrl.u32 %v204, 7
    %v206 = vsub.s32 %v203, %v205
    %v207 = vrot.slane %v180, %v206
    %v209 = vunpack.c.l.s4 1983009808
    %v210 = vunpack.c.0.s8 %v209
    %v211 = vlaneseq
    %v212 = vshrl.u32 %v211, 7
    %v213 = vsub.s32 %v210, %v212
    %v214 = vrot.slane %v200, %v213
    %v215 = vcombine.high %v207, %v207
    %v216 = vcombine.high %v214, %v214
    %v225 = vsel %vm98, %v190, 0.0
    %v226 = vsel %vm98, %v198, 0.0
    %v227 = vadd.f32 %v225, %v226
    %v228 = vsel %vm98, %v197, 0.0
    %v229 = vadd.f32 %v227, %v228
    %v230 = vsel %vm98, %v199, 0.0
    %v231 = vadd.f32 %v229, %v230
    %v232 = vsel %vm98, %v207, 0.0
    %v233 = vadd.f32 %v231, %v232
    %v234 = vsel %vm98, %v215, 0.0
    %v235 = vadd.f32 %v233, %v234
    %v236 = vsel %vm98, %v214, 0.0
    %v237 = vadd.f32 %v235, %v236
    %v238 = vsel %vm98, %v216, 0.0
    %v239 = vadd.f32 %v237, %v238
    %240 = vadd.xlane.f32.xlu0 %v239
    %v241 = vpop.xlane.xlu0 %240
    %v242 = vmax.f32 %v178, 1e-24
    %v243 = vrsqrt.pop %v242
    %v244 = vmax.f32 %v241, 1e-24
    %v245 = vrsqrt.pop %v244
    %v246 = vmul.f32 %v243, %v245
    %v247 = vmul.f32 %v115, %v246
    %v248 = vsub.f32 1.0, %v247
    %vm249 = vcmask 1024
    %250 = vst.msk [vmem:[%s2] sm:$0x3] %vm249, %v248
  $region17: #{cosine_loss.1} parent=0 // pred_fallthru
    _
  // Predicated region
  $region18: #{cosine_loss.1} parent=0 // pred_check
    _
  $region19: #{cosine_loss.1} parent=0 // pred_check_branch
    %252 = sbr.rel (0) target = $region21
  $region20: #{cosine_loss.1} parent=0 // pred_region
    _
  $region21: #{cosine_loss.1} parent=0 // pred_fallthru
    _
  // Predicated region
  $region22: #{cosine_loss.1} parent=0 // pred_check
    _
  $region23: #{cosine_loss.1} parent=0 // pred_check_branch
    %254 = sbr.rel (0) target = $region25
  $region24: #{cosine_loss.1} parent=0 // pred_region
    _
  $region25: #{cosine_loss.1} parent=0 // pred_fallthru
    _

</llo_original>
